<compile_context>
chip_gen: v5e
topology: v5e:2x2
jax: 0.10.0
libtpu: 0.0.40
codegen_flags: <defaults>
</compile_context>

<pallas_src>
import jax
import jax.numpy as jnp
from jax import lax
from jax.experimental import pallas as pl
from jax.experimental.pallas import tpu as pltpu


def _dictupdate_kernel(d_ref, x_ref, o_ref):
    d = d_ref[...]                                     # (A, P2) f32, resident across N tiles
    x = x_ref[...]                                     # (A, TN) f32 (last tile may hold garbage
                                                       #  in the out-of-range columns; clipped on store)

    # torch.nn.functional.normalize(D, p=2, dim=1, eps=1e-10):
    #   D / max(||row||_2, 1e-10)  ==  D * rsqrt(max(sum_sq, 1e-20))
    # rsqrt runs on the EUP (own VLIW slot), the lane-reduce on the XLU.
    sum_sq = jnp.sum(d * d, axis=1, keepdims=True)     # (A, 1)  XLU
    inv_norm = lax.rsqrt(jnp.maximum(sum_sq, 1e-20))   # EUP
    d_n = d * inv_norm                                 # (A, P2) VPU

    # out_tile = D_n.T @ x_tile : contract over the atom axis; the MXU consumes
    # the transposed-LHS form directly (no XLU transpose of D_n).
    # precision=HIGHEST for f32 parity with torch.matmul; cost is hidden under
    # the HBM-bound roofline (K=32, P2=64 underfill the MXU anyway).
    o_ref[...] = lax.dot_general(
        d_n, x,
        dimension_numbers=(((0,), (0,)), ((), ())),
        preferred_element_type=jnp.float32,
        precision=lax.Precision.HIGHEST,
    )                                                  # (P2, TN) f32


def dictupdate_forward(dictionary, x, *, tn=1024):
    """dictionary: (A, P2), x: (A, N) -> (P2, N) float32."""
    if dictionary.dtype != jnp.float32:
        dictionary = dictionary.astype(jnp.float32)
    if x.dtype != jnp.float32:
        x = x.astype(jnp.float32)

    A, P2 = dictionary.shape
    A2, N = x.shape
    assert A == A2, "x must have number_of_atoms rows"

    # Lane-dense tile width: multiple of 128, capped at the lane-rounded N so
    # tiny inputs run as a single tile.  No padding / slicing of the data:
    # out_shape is exactly (P2, N) and Pallas clips the ragged last tile.
    lane = 128
    n_lane = pl.cdiv(N, lane) * lane
    tn = max(lane, min(tn, n_lane))
    tn = (tn // lane) * lane
    grid = (pl.cdiv(N, tn),)

    out = pl.pallas_call(
        _dictupdate_kernel,
        out_shape=jax.ShapeDtypeStruct((P2, N), jnp.float32),
        grid_spec=pltpu.PrefetchScalarGridSpec(
            num_scalar_prefetch=0,
            grid=grid,
            in_specs=[
                # D: same block every grid step -> DMA'd once, VMEM-resident.
                pl.BlockSpec((A, P2), lambda i: (0, 0)),
                # x: tiled along N, double-buffered by BlockSpec pipelining.
                pl.BlockSpec((A, tn), lambda i: (0, i)),
            ],
            out_specs=pl.BlockSpec((P2, tn), lambda i: (0, i)),
        ),
        compiler_params=pltpu.CompilerParams(
            # N tiles are fully independent -> shard across TensorCores (v7x).
            dimension_semantics=("parallel",),
            # Working set is ~1.5 MB at TN=1024; 32 MiB scoped limit is ample
            # on v5e/v6e/v7x alike -- no need to trade headroom.
            vmem_limit_bytes=32 * 1024 * 1024,
        ),
    )(dictionary, x)

    return out


if __name__ == "__main__":
    # Small shapes consistent with the module's forward.
    number_of_atoms = 32
    patchsize = 8
    P2 = patchsize ** 2          # 64
    N = 300                      # not a multiple of 128 -> exercises the ragged last tile

    key = jax.random.PRNGKey(0)
    k_dict, k_x = jax.random.split(key)

    # torch.rand equivalent: uniform [0, 1) parameter init.
    dictionary = jax.random.uniform(k_dict, (number_of_atoms, P2), dtype=jnp.float32)
    x = jax.random.normal(k_x, (number_of_atoms, N), dtype=jnp.float32)

    out = dictupdate_forward(dictionary, x)
    jax.block_until_ready(out)

    # Reference in plain JAX (same math as the PyTorch forward), at matching precision.
    row_norm = jnp.sqrt(jnp.sum(dictionary * dictionary, axis=1, keepdims=True))
    d_n = dictionary / jnp.maximum(row_norm, 1e-10)
    ref = jnp.matmul(d_n.T, x, precision=lax.Precision.HIGHEST).astype(jnp.float32)

    assert out.shape == (P2, N)
    assert out.dtype == jnp.float32
    # Every column (including those in the ragged last tile, whose in-kernel
    # overhang columns held garbage) must match the reference: garbage is only
    # ever produced in output columns that Pallas clips on writeback.
    err = float(jnp.max(jnp.abs(out - ref)))
    assert jnp.allclose(out, ref, atol=1e-4, rtol=1e-4), err
    assert bool(jnp.all(jnp.isfinite(out)))

    print("KERNEL_OK")
</pallas_src>

<mosaic_0001>
module attributes {stable_mosaic.version = 11 : i64} {
  func.func @_dictupdate_kernel(%arg0: i32, %arg1: memref<32x64xf32, #tpu.memory_space<vmem>>, %arg2: memref<32x384xf32, #tpu.memory_space<vmem>>, %arg3: memref<64x384xf32, #tpu.memory_space<vmem>>) attributes {dimension_semantics = [#tpu.dimension_semantics<parallel>], iteration_bounds = array<i64: 1>, scalar_prefetch = 0 : i64, scratch_operands = 0 : i64, tpu.core_type = #tpu.core_type<tc>, window_params = [{pipeline_mode = #tpu.pipeline_mode<synchronous>, transform_indices = @transform_0, window_bounds = array<i64: 32, 64>}, {transform_indices = @transform_1, window_bounds = array<i64: 32, 384>}, {transform_indices = @transform_2, window_bounds = array<i64: 64, 384>}]} {
    %c0 = arith.constant 0 : index
    %c0_0 = arith.constant 0 : index
    %0 = vector.load %arg1[%c0, %c0_0] : memref<32x64xf32, #tpu.memory_space<vmem>>, vector<32x64xf32>
    %c0_1 = arith.constant 0 : index
    %c0_2 = arith.constant 0 : index
    %1 = vector.load %arg2[%c0_1, %c0_2] : memref<32x384xf32, #tpu.memory_space<vmem>>, vector<32x384xf32>
    %2 = arith.mulf %0, %0 : vector<32x64xf32>
    %cst = arith.constant dense<0.000000e+00> : vector<32xf32>
    %3 = vector.multi_reduction <add>, %2, %cst [1] : vector<32x64xf32> to vector<32xf32>
    %4 = vector.shape_cast %3 : vector<32xf32> to vector<32x1xf32>
    %cst_3 = arith.constant 9.99999968E-21 : f32
    %5 = vector.broadcast %cst_3 : f32 to vector<32x1xf32>
    %6 = arith.maximumf %4, %5 : vector<32x1xf32>
    %7 = math.rsqrt %6 : vector<32x1xf32>
    %8 = vector.broadcast %7 : vector<32x1xf32> to vector<32x64xf32>
    %9 = arith.mulf %0, %8 : vector<32x64xf32>
    %cst_4 = arith.constant dense<0.000000e+00> : vector<64x384xf32>
    %10 = tpu.matmul %9, %1, %cst_4 {dimension_numbers = #tpu.dot_dimension_numbers<[0], [0], [1], [1], [0, 1, 1, 1], [], []>, precision = #tpu.contract_precision<fp32>} : vector<32x64xf32>, vector<32x384xf32>, vector<64x384xf32> -> vector<64x384xf32>
    %c0_5 = arith.constant 0 : index
    %c0_6 = arith.constant 0 : index
    %11 = vector.load %arg3[%c0_5, %c0_6] : memref<64x384xf32, #tpu.memory_space<vmem>>, vector<64x384xf32>
    tpu.vector_store %arg3[%c0_5, %c0_6], %10 {strides = array<i32>} : memref<64x384xf32, #tpu.memory_space<vmem>>, vector<64x384xf32>,
    return
  }
  func.func @transform_0(%arg0: i32) -> (i32, i32) {
    %c0_i32 = arith.constant 0 : i32
    %c0_i32_0 = arith.constant 0 : i32
    %c0_i32_1 = arith.constant 0 : i32
    return %c0_i32, %c0_i32_0 : i32, i32
  }
  func.func @transform_1(%arg0: i32) -> (i32, i32) {
    %c0_i32 = arith.constant 0 : i32
    %c0_i32_0 = arith.constant 0 : i32
    return %c0_i32, %arg0 : i32, i32
  }
  func.func @transform_2(%arg0: i32) -> (i32, i32) {
    %c0_i32 = arith.constant 0 : i32
    %c0_i32_0 = arith.constant 0 : i32
    return %c0_i32, %arg0 : i32, i32
  }
}

</mosaic_0001>

<llo_original>
// kernel: tpu_custom_call.1
$region0: #{tpu_custom_call.1}
  #allocation0 [shape = 'u32[]', space=smem, size = 0x4, offset = 0x4, fixed_abs, tag = 'smem constant byte address 0x4 - core index']
  #allocation1 [shape = 'u32[72,128]{1,0:T(1,128)}', space=vmem, size = 0x9000, scoped, tag = 'internal scratch']
  %s0 = inlined_call_operand.hbm [shape: f32[32,64], index: 0, kind: input, shape index: {}]
  %s1 = inlined_call_operand.hbm [shape: f32[32,300], index: 1, kind: input, shape index: {}]
  %s2 = inlined_call_operand.hbm [shape: f32[64,300], index: 2, kind: output, shape index: {}]
  %s3 = sld [smem:[#allocation0]]
  $region26: #{tpu_custom_call.1} parent=0
    _
  %s5 = ssub.s32 1, %s3
  %s6 = scalar_select 0, %s5, %s3
  $region1: #{tpu_custom_call.1} parent=0
    #allocation2 [shape = 'u8[16384]{0}', space=vmem, size = 0x4000, scoped, tag = 'input window, operand 0, single buffered']
    #allocation3 [shape = 's32[1]{0}', space=sflag, size = 0x4, scoped, tag = 'scoped memory for tpu_custom_call.1']
    #allocation4 [shape = 's32[1]{0}', space=sflag, size = 0x4, scoped, tag = 'scoped memory for tpu_custom_call.1']
    #allocation5 [shape = 'u8[49152]{0}', space=vmem, size = 0xc000, scoped, tag = 'input window, operand 1, single buffered']
    #allocation6 [shape = 's32[1]{0}', space=sflag, size = 0x4, scoped, tag = 'scoped memory for tpu_custom_call.1']
    #allocation7 [shape = 'u8[98304]{0}', space=vmem, size = 0x18000, scoped, tag = 'output window, operand 0, single buffered']
    %7 = vsyncpa [#allocation3], 0
    %8 = vsyncpa [#allocation6], 0
    %9 = vsyncpa [#allocation4], 0
    // Predicated region
    $region2: #{tpu_custom_call.1} parent=1 // pred_check
      _
    $region3: #{tpu_custom_call.1} parent=1 // pred_check_branch
      %11 = sbr.rel (0) target = $region5
    $region4: #{tpu_custom_call.1} parent=1 // pred_region
      %13 = vsyncadd [#allocation3], 0
      %s14 = sshll.u32 %s0, 4
      %s15 = int_to_ptr.hbm [resolvable:$true] %s14
      %s16 = sshll.u32 [#allocation2], 4
      %s17 = int_to_ptr.vmem [resolvable:$true] %s16
      %22 = dma.hbm_to_vmem [thread:$0]  %s15, 512, %s17, [#allocation3], 128, 128, 8
    $region5: #{tpu_custom_call.1} parent=1 // pred_fallthru
      _
    // Predicated region
    $region6: #{tpu_custom_call.1} parent=1 // pred_check
      _
    $region7: #{tpu_custom_call.1} parent=1 // pred_check_branch
      %24 = sbr.rel (0) target = $region9
    $region8: #{tpu_custom_call.1} parent=1 // pred_region
      %26 = vsyncadd [#allocation6], 0
      %s27 = sshll.u32 %s1, 4
      %s28 = int_to_ptr.hbm [resolvable:$true] %s27
      %s29 = sshll.u32 [#allocation5], 4
      %s30 = int_to_ptr.vmem [resolvable:$true] %s29
      %35 = dma.hbm_to_vmem [thread:$0]  %s28, 1536, %s30, [#allocation6], 384, 384, 24
    $region9: #{tpu_custom_call.1} parent=1 // pred_fallthru
      _
    // Predicated region
    $region10: #{tpu_custom_call.1} parent=1 // pred_check
      _
    $region11: #{tpu_custom_call.1} parent=1 // pred_check_branch
      %37 = sbr.rel (0) target = $region13
    $region12: #{tpu_custom_call.1} parent=1 // pred_region
      %39 = dma.done [#allocation3], 512
    $region13: #{tpu_custom_call.1} parent=1 // pred_fallthru
      _
    // Predicated region
    $region14: #{tpu_custom_call.1} parent=1 // pred_check
      _
    $region15: #{tpu_custom_call.1} parent=1 // pred_check_branch
      %41 = sbr.rel (0) target = $region17
    $region16: #{tpu_custom_call.1} parent=1 // pred_region
      %43 = dma.done [#allocation6], 1536
    $region17: #{tpu_custom_call.1} parent=1 // pred_fallthru
      _
    %v44 = vld [vmem:[#allocation2] sm:$0xff]
    %v45 = vld [vmem:[#allocation2 + $0x8] sm:$0xff]
    %v46 = vld [vmem:[#allocation2 + $0x10] sm:$0xff]
    %v47 = vld [vmem:[#allocation2 + $0x18] sm:$0xff]
    %v48 = vld [vmem:[#allocation5] sm:$0xff]
    %v49 = vld [vmem:[#allocation5 + $0x8] sm:$0xff]
    %v50 = vld [vmem:[#allocation5 + $0x10] sm:$0xff]
    %v51 = vld [vmem:[#allocation5 + $0x18] sm:$0xff]
    %v52 = vld [vmem:[#allocation5 + $0x20] sm:$0xff]
    %v53 = vld [vmem:[#allocation5 + $0x28] sm:$0xff]
    %v54 = vld [vmem:[#allocation5 + $0x30] sm:$0xff]
    %v55 = vld [vmem:[#allocation5 + $0x38] sm:$0xff]
    %v56 = vld [vmem:[#allocation5 + $0x40] sm:$0xff]
    %v57 = vld [vmem:[#allocation5 + $0x48] sm:$0xff]
    %v58 = vld [vmem:[#allocation5 + $0x50] sm:$0xff]
    %v59 = vld [vmem:[#allocation5 + $0x58] sm:$0xff]
    %v60 = vmul.f32 %v44, %v44
    %v61 = vmul.f32 %v45, %v45
    %v62 = vmul.f32 %v46, %v46
    %v63 = vmul.f32 %v47, %v47
    %vm64 = vcmask 523264
    %v65 = vsel %vm64, %v60, 0.0
    %66 = vadd.xlane.f32.xlu0 %v65
    %v67 = vpop.xlane.xlu0 %66
    %v68 = vsel %vm64, %v61, 0.0
    %69 = vadd.xlane.f32.xlu0 %v68
    %v70 = vpop.xlane.xlu0 %69
    %v71 = vsel %vm64, %v62, 0.0
    %72 = vadd.xlane.f32.xlu0 %v71
    %v73 = vpop.xlane.xlu0 %72
    %v74 = vsel %vm64, %v63, 0.0
    %75 = vadd.xlane.f32.xlu0 %v74
    %v76 = vpop.xlane.xlu0 %75
    %v77 = vmax.f32 %v67, 1e-20
    %v78 = vmax.f32 %v70, 1e-20
    %v79 = vmax.f32 %v73, 1e-20
    %v80 = vmax.f32 %v76, 1e-20
    %v81 = vrsqrt.pop %v77
    %v82 = vmul.f32 %v81, %v77
    %v83 = vmul.f32 %v82, %v81
    %v84 = vmul.f32 0.5, %v83
    %v85 = vsub.f32 1.5, %v84
    %v86 = vmul.f32 %v81, %v85
    %vm87 = vweird.f32 %v77
    %vm88 = vweird.f32 %v81
    %vm89 = vmor %vm87, %vm88
    %v90 = vsel %vm89, %v81, %v86
    %v91 = vrsqrt.pop %v78
    %v92 = vmul.f32 %v91, %v78
    %v93 = vmul.f32 %v92, %v91
    %v94 = vmul.f32 0.5, %v93
    %v95 = vsub.f32 1.5, %v94
    %v96 = vmul.f32 %v91, %v95
    %vm97 = vweird.f32 %v78
    %vm98 = vweird.f32 %v91
    %vm99 = vmor %vm97, %vm98
    %v100 = vsel %vm99, %v91, %v96
    %v101 = vrsqrt.pop %v79
    %v102 = vmul.f32 %v101, %v79
    %v103 = vmul.f32 %v102, %v101
    %v104 = vmul.f32 0.5, %v103
    %v105 = vsub.f32 1.5, %v104
    %v106 = vmul.f32 %v101, %v105
    %vm107 = vweird.f32 %v79
    %vm108 = vweird.f32 %v101
    %vm109 = vmor %vm107, %vm108
    %v110 = vsel %vm109, %v101, %v106
    %v111 = vrsqrt.pop %v80
    %v112 = vmul.f32 %v111, %v80
    %v113 = vmul.f32 %v112, %v111
    %v114 = vmul.f32 0.5, %v113
    %v115 = vsub.f32 1.5, %v114
    %v116 = vmul.f32 %v111, %v115
    %vm117 = vweird.f32 %v80
    %vm118 = vweird.f32 %v111
    %vm119 = vmor %vm117, %vm118
    %v120 = vsel %vm119, %v111, %v116
    %v121 = vmul.f32 %v44, %v90
    %v122 = vmul.f32 %v45, %v100
    %v123 = vmul.f32 %v46, %v110
    %v124 = vmul.f32 %v47, %v120
    %125 = vxpose.xlu0.b32.start [1/16] %v121, 128
    %126 = vxpose.xlu0.b32.cont [2/16] %v122, 128
    %127 = vxpose.xlu0.b32.cont [3/16] %v123, 128
    %128 = vxpose.xlu0.b32.cont [4/16] %v124, 128
    %129 = vxpose.xlu0.b32.cont [5/16] 0.0, 128
    %130 = vxpose.xlu0.b32.cont [6/16] 0.0, 128
    %131 = vxpose.xlu0.b32.cont [7/16] 0.0, 128
    %132 = vxpose.xlu0.b32.cont [8/16] 0.0, 128
    %133 = vxpose.xlu0.b32.cont [9/16] 0.0, 128
    %134 = vxpose.xlu0.b32.cont [10/16] 0.0, 128
    %135 = vxpose.xlu0.b32.cont [11/16] 0.0, 128
    %136 = vxpose.xlu0.b32.cont [12/16] 0.0, 128
    %137 = vxpose.xlu0.b32.cont [13/16] 0.0, 128
    %138 = vxpose.xlu0.b32.cont [14/16] 0.0, 128
    %139 = vxpose.xlu0.b32.cont [15/16] 0.0, 128
    %140 = vxpose.xlu0.b32.end [16/16] 0.0, 128
    %v141 = vpop.trf.xlu0
    %v142 = vpop.trf.xlu0
    %v143 = vpop.trf.xlu0
    %v144 = vpop.trf.xlu0
    %v145 = vpop.trf.xlu0
    %v146 = vpop.trf.xlu0
    %v147 = vpop.trf.xlu0
    %v148 = vpop.trf.xlu0
    %v149 = vpop.trf.xlu0
    %v150 = vpop.trf.xlu0
    %v151 = vpop.trf.xlu0
    %v152 = vpop.trf.xlu0
    %v153 = vpop.trf.xlu0
    %v154 = vpop.trf.xlu0
    %v155 = vpop.trf.xlu0
    %v156 = vpop.trf.xlu0
    %vm157 = vcmask 261120
    %v159 = vsel %vm157, %v141, 0
    %v162 = vsel %vm157, %v142, 0
    %v165 = vsel %vm157, %v143, 0
    %v168 = vsel %vm157, %v144, 0
    %v171 = vsel %vm157, %v145, 0
    %v174 = vsel %vm157, %v146, 0
    %v177 = vsel %vm157, %v147, 0
    %v180 = vsel %vm157, %v148, 0
    %182 = vmatpush.msra.mxu0 0.0
    %183 = vmatpush.msra.mxu0 0.0
    %184 = vmatpush.msra.mxu0 0.0
    %185 = vmatpush.msra.mxu0 0.0
    %186 = vmatpush.msra.mxu0 0.0
    %187 = vmatpush.msra.mxu0 0.0
    %188 = vmatpush.msra.mxu0 0.0
    %189 = vmatpush.msra.mxu0 0.0
    %190 = vmatpush.msra.mxu0 0.0
    %191 = vmatpush.msra.mxu0 0.0
    %192 = vmatpush.msra.mxu0 0.0
    %193 = vmatpush.msra.mxu0 0.0
    %v194 = vand.u32 %v57, 4294901760
    %195 = vmatpush.msra.mxu0 %v194
    %v196 = vand.u32 %v54, 4294901760
    %197 = vmatpush.msra.mxu0 %v196
    %v198 = vand.u32 %v51, 4294901760
    %199 = vmatpush.msra.mxu0 %v198
    %v200 = vand.u32 %v48, 4294901760
    %201 = vmatpush.msra.mxu0 %v200
    %v202 = vand.u32 %v159, 4294901760
    %v203 = vsub.f32 %v159, %v202
    %v204 = vand.u32 %v203, 4294901760
    %v205 = vsub.f32 %v203, %v204
    %v206 = vand.u32 %v205, 4294901760
    %207 = vmatmul.f32.gmra.mxu0 %v206
    %v208 = vpop.f32.mrf.mxu0
    %v209 = vadd.f32 0.0, %v208
    %v210 = vand.u32 %v162, 4294901760
    %v211 = vsub.f32 %v162, %v210
    %v212 = vand.u32 %v211, 4294901760
    %v213 = vsub.f32 %v211, %v212
    %v214 = vand.u32 %v213, 4294901760
    %215 = vmatmul.f32.gmra.mxu0 %v214
    %v216 = vpop.f32.mrf.mxu0
    %v217 = vadd.f32 0.0, %v216
    %v218 = vand.u32 %v165, 4294901760
    %v219 = vsub.f32 %v165, %v218
    %v220 = vand.u32 %v219, 4294901760
    %v221 = vsub.f32 %v219, %v220
    %v222 = vand.u32 %v221, 4294901760
    %223 = vmatmul.f32.gmra.mxu0 %v222
    %v224 = vpop.f32.mrf.mxu0
    %v225 = vadd.f32 0.0, %v224
    %v226 = vand.u32 %v168, 4294901760
    %v227 = vsub.f32 %v168, %v226
    %v228 = vand.u32 %v227, 4294901760
    %v229 = vsub.f32 %v227, %v228
    %v230 = vand.u32 %v229, 4294901760
    %231 = vmatmul.f32.gmra.mxu0 %v230
    %v232 = vpop.f32.mrf.mxu0
    %v233 = vadd.f32 0.0, %v232
    %v234 = vand.u32 %v171, 4294901760
    %v235 = vsub.f32 %v171, %v234
    %v236 = vand.u32 %v235, 4294901760
    %v237 = vsub.f32 %v235, %v236
    %v238 = vand.u32 %v237, 4294901760
    %239 = vmatmul.f32.gmra.mxu0 %v238
    %v240 = vpop.f32.mrf.mxu0
    %v241 = vadd.f32 0.0, %v240
    %v242 = vand.u32 %v174, 4294901760
    %v243 = vsub.f32 %v174, %v242
    %v244 = vand.u32 %v243, 4294901760
    %v245 = vsub.f32 %v243, %v244
    %v246 = vand.u32 %v245, 4294901760
    %247 = vmatmul.f32.gmra.mxu0 %v246
    %v248 = vpop.f32.mrf.mxu0
    %v249 = vadd.f32 0.0, %v248
    %v250 = vand.u32 %v177, 4294901760
    %v251 = vsub.f32 %v177, %v250
    %v252 = vand.u32 %v251, 4294901760
    %v253 = vsub.f32 %v251, %v252
    %v254 = vand.u32 %v253, 4294901760
    %255 = vmatmul.f32.gmra.mxu0 %v254
    %v256 = vpop.f32.mrf.mxu0
    %v257 = vadd.f32 0.0, %v256
    %v258 = vand.u32 %v180, 4294901760
    %v259 = vsub.f32 %v180, %v258
    %v260 = vand.u32 %v259, 4294901760
    %v261 = vsub.f32 %v259, %v260
    %v262 = vand.u32 %v261, 4294901760
    %263 = vmatmul.f32.gmra.mxu0 %v262
    %v264 = vpop.f32.mrf.mxu0
    %v265 = vadd.f32 0.0, %v264
    %266 = vdwg.mxu0
    %267 = vmatpush.msra.mxu0 0.0
    %268 = vmatpush.msra.mxu0 0.0
    %269 = vmatpush.msra.mxu0 0.0
    %270 = vmatpush.msra.mxu0 0.0
    %271 = vmatpush.msra.mxu0 0.0
    %272 = vmatpush.msra.mxu0 0.0
    %273 = vmatpush.msra.mxu0 0.0
    %274 = vmatpush.msra.mxu0 0.0
    %275 = vmatpush.msra.mxu0 0.0
    %276 = vmatpush.msra.mxu0 0.0
    %277 = vmatpush.msra.mxu0 0.0
    %278 = vmatpush.msra.mxu0 0.0
    %v279 = vand.u32 %v57, 4294901760
    %v280 = vsub.f32 %v57, %v279
    %v281 = vand.u32 %v280, 4294901760
    %v282 = vsub.f32 %v280, %v281
    %v283 = vand.u32 %v282, 4294901760
    %284 = vmatpush.msra.mxu0 %v283
    %v285 = vand.u32 %v54, 4294901760
    %v286 = vsub.f32 %v54, %v285
    %v287 = vand.u32 %v286, 4294901760
    %v288 = vsub.f32 %v286, %v287
    %v289 = vand.u32 %v288, 4294901760
    %290 = vmatpush.msra.mxu0 %v289
    %v291 = vand.u32 %v51, 4294901760
    %v292 = vsub.f32 %v51, %v291
    %v293 = vand.u32 %v292, 4294901760
    %v294 = vsub.f32 %v292, %v293
    %v295 = vand.u32 %v294, 4294901760
    %296 = vmatpush.msra.mxu0 %v295
    %v297 = vand.u32 %v48, 4294901760
    %v298 = vsub.f32 %v48, %v297
    %v299 = vand.u32 %v298, 4294901760
    %v300 = vsub.f32 %v298, %v299
    %v301 = vand.u32 %v300, 4294901760
    %302 = vmatpush.msra.mxu0 %v301
    %v303 = vand.u32 %v159, 4294901760
    %304 = vmatmul.f32.gmra.mxu0 %v303
    %v305 = vpop.f32.mrf.mxu0
    %v306 = vadd.f32 %v209, %v305
    %v307 = vand.u32 %v162, 4294901760
    %308 = vmatmul.f32.gmra.mxu0 %v307
    %v309 = vpop.f32.mrf.mxu0
    %v310 = vadd.f32 %v217, %v309
    %v311 = vand.u32 %v165, 4294901760
    %312 = vmatmul.f32.gmra.mxu0 %v311
    %v313 = vpop.f32.mrf.mxu0
    %v314 = vadd.f32 %v225, %v313
    %v315 = vand.u32 %v168, 4294901760
    %316 = vmatmul.f32.gmra.mxu0 %v315
    %v317 = vpop.f32.mrf.mxu0
    %v318 = vadd.f32 %v233, %v317
    %v319 = vand.u32 %v171, 4294901760
    %320 = vmatmul.f32.gmra.mxu0 %v319
    %v321 = vpop.f32.mrf.mxu0
    %v322 = vadd.f32 %v241, %v321
    %v323 = vand.u32 %v174, 4294901760
    %324 = vmatmul.f32.gmra.mxu0 %v323
    %v325 = vpop.f32.mrf.mxu0
    %v326 = vadd.f32 %v249, %v325
    %v327 = vand.u32 %v177, 4294901760
    %328 = vmatmul.f32.gmra.mxu0 %v327
    %v329 = vpop.f32.mrf.mxu0
    %v330 = vadd.f32 %v257, %v329
    %v331 = vand.u32 %v180, 4294901760
    %332 = vmatmul.f32.gmra.mxu0 %v331
    %v333 = vpop.f32.mrf.mxu0
    %v334 = vadd.f32 %v265, %v333
    %335 = vdwg.mxu0
    %336 = vmatpush.msra.mxu0 0.0
    %337 = vmatpush.msra.mxu0 0.0
    %338 = vmatpush.msra.mxu0 0.0
    %339 = vmatpush.msra.mxu0 0.0
    %340 = vmatpush.msra.mxu0 0.0
    %341 = vmatpush.msra.mxu0 0.0
    %342 = vmatpush.msra.mxu0 0.0
    %343 = vmatpush.msra.mxu0 0.0
    %344 = vmatpush.msra.mxu0 0.0
    %345 = vmatpush.msra.mxu0 0.0
    %346 = vmatpush.msra.mxu0 0.0
    %347 = vmatpush.msra.mxu0 0.0
    %v348 = vand.u32 %v57, 4294901760
    %v349 = vsub.f32 %v57, %v348
    %350 = vmatpush.msra.mxu0 %v349
    %v351 = vand.u32 %v54, 4294901760
    %v352 = vsub.f32 %v54, %v351
    %353 = vmatpush.msra.mxu0 %v352
    %v354 = vand.u32 %v51, 4294901760
    %v355 = vsub.f32 %v51, %v354
    %356 = vmatpush.msra.mxu0 %v355
    %v357 = vand.u32 %v48, 4294901760
    %v358 = vsub.f32 %v48, %v357
    %359 = vmatpush.msra.mxu0 %v358
    %v360 = vand.u32 %v159, 4294901760
    %v361 = vsub.f32 %v159, %v360
    %362 = vmatmul.f32.gmra.mxu0 %v361
    %v363 = vpop.f32.mrf.mxu0
    %v364 = vadd.f32 %v306, %v363
    %v365 = vand.u32 %v162, 4294901760
    %v366 = vsub.f32 %v162, %v365
    %367 = vmatmul.f32.gmra.mxu0 %v366
    %v368 = vpop.f32.mrf.mxu0
    %v369 = vadd.f32 %v310, %v368
    %v370 = vand.u32 %v165, 4294901760
    %v371 = vsub.f32 %v165, %v370
    %372 = vmatmul.f32.gmra.mxu0 %v371
    %v373 = vpop.f32.mrf.mxu0
    %v374 = vadd.f32 %v314, %v373
    %v375 = vand.u32 %v168, 4294901760
    %v376 = vsub.f32 %v168, %v375
    %377 = vmatmul.f32.gmra.mxu0 %v376
    %v378 = vpop.f32.mrf.mxu0
    %v379 = vadd.f32 %v318, %v378
    %v380 = vand.u32 %v171, 4294901760
    %v381 = vsub.f32 %v171, %v380
    %382 = vmatmul.f32.gmra.mxu0 %v381
    %v383 = vpop.f32.mrf.mxu0
    %v384 = vadd.f32 %v322, %v383
    %v385 = vand.u32 %v174, 4294901760
    %v386 = vsub.f32 %v174, %v385
    %387 = vmatmul.f32.gmra.mxu0 %v386
    %v388 = vpop.f32.mrf.mxu0
    %v389 = vadd.f32 %v326, %v388
    %v390 = vand.u32 %v177, 4294901760
    %v391 = vsub.f32 %v177, %v390
    %392 = vmatmul.f32.gmra.mxu0 %v391
    %v393 = vpop.f32.mrf.mxu0
    %v394 = vadd.f32 %v330, %v393
    %v395 = vand.u32 %v180, 4294901760
    %v396 = vsub.f32 %v180, %v395
    %397 = vmatmul.f32.gmra.mxu0 %v396
    %v398 = vpop.f32.mrf.mxu0
    %v399 = vadd.f32 %v334, %v398
    %400 = vdwg.mxu0
    %401 = vmatpush.msra.mxu0 0.0
    %402 = vmatpush.msra.mxu0 0.0
    %403 = vmatpush.msra.mxu0 0.0
    %404 = vmatpush.msra.mxu0 0.0
    %405 = vmatpush.msra.mxu0 0.0
    %406 = vmatpush.msra.mxu0 0.0
    %407 = vmatpush.msra.mxu0 0.0
    %408 = vmatpush.msra.mxu0 0.0
    %409 = vmatpush.msra.mxu0 0.0
    %410 = vmatpush.msra.mxu0 0.0
    %411 = vmatpush.msra.mxu0 0.0
    %412 = vmatpush.msra.mxu0 0.0
    %v413 = vand.u32 %v57, 4294901760
    %414 = vmatpush.msra.mxu0 %v413
    %v415 = vand.u32 %v54, 4294901760
    %416 = vmatpush.msra.mxu0 %v415
    %v417 = vand.u32 %v51, 4294901760
    %418 = vmatpush.msra.mxu0 %v417
    %v419 = vand.u32 %v48, 4294901760
    %420 = vmatpush.msra.mxu0 %v419
    %v421 = vand.u32 %v159, 4294901760
    %v422 = vsub.f32 %v159, %v421
    %v423 = vand.u32 %v422, 4294901760
    %424 = vmatmul.f32.gmra.mxu0 %v423
    %v425 = vpop.f32.mrf.mxu0
    %v426 = vadd.f32 %v364, %v425
    %v427 = vand.u32 %v162, 4294901760
    %v428 = vsub.f32 %v162, %v427
    %v429 = vand.u32 %v428, 4294901760
    %430 = vmatmul.f32.gmra.mxu0 %v429
    %v431 = vpop.f32.mrf.mxu0
    %v432 = vadd.f32 %v369, %v431
    %v433 = vand.u32 %v165, 4294901760
    %v434 = vsub.f32 %v165, %v433
    %v435 = vand.u32 %v434, 4294901760
    %436 = vmatmul.f32.gmra.mxu0 %v435
    %v437 = vpop.f32.mrf.mxu0
    %v438 = vadd.f32 %v374, %v437
    %v439 = vand.u32 %v168, 4294901760
    %v440 = vsub.f32 %v168, %v439
    %v441 = vand.u32 %v440, 4294901760
    %442 = vmatmul.f32.gmra.mxu0 %v441
    %v443 = vpop.f32.mrf.mxu0
    %v444 = vadd.f32 %v379, %v443
    %v445 = vand.u32 %v171, 4294901760
    %v446 = vsub.f32 %v171, %v445
    %v447 = vand.u32 %v446, 4294901760
    %448 = vmatmul.f32.gmra.mxu0 %v447
    %v449 = vpop.f32.mrf.mxu0
    %v450 = vadd.f32 %v384, %v449
    %v451 = vand.u32 %v174, 4294901760
    %v452 = vsub.f32 %v174, %v451
    %v453 = vand.u32 %v452, 4294901760
    %454 = vmatmul.f32.gmra.mxu0 %v453
    %v455 = vpop.f32.mrf.mxu0
    %v456 = vadd.f32 %v389, %v455
    %v457 = vand.u32 %v177, 4294901760
    %v458 = vsub.f32 %v177, %v457
    %v459 = vand.u32 %v458, 4294901760
    %460 = vmatmul.f32.gmra.mxu0 %v459
    %v461 = vpop.f32.mrf.mxu0
    %v462 = vadd.f32 %v394, %v461
    %v463 = vand.u32 %v180, 4294901760
    %v464 = vsub.f32 %v180, %v463
    %v465 = vand.u32 %v464, 4294901760
    %466 = vmatmul.f32.gmra.mxu0 %v465
    %v467 = vpop.f32.mrf.mxu0
    %v468 = vadd.f32 %v399, %v467
    %469 = vdwg.mxu0
    %470 = vmatpush.msra.mxu0 0.0
    %471 = vmatpush.msra.mxu0 0.0
    %472 = vmatpush.msra.mxu0 0.0
    %473 = vmatpush.msra.mxu0 0.0
    %474 = vmatpush.msra.mxu0 0.0
    %475 = vmatpush.msra.mxu0 0.0
    %476 = vmatpush.msra.mxu0 0.0
    %477 = vmatpush.msra.mxu0 0.0
    %478 = vmatpush.msra.mxu0 0.0
    %479 = vmatpush.msra.mxu0 0.0
    %480 = vmatpush.msra.mxu0 0.0
    %481 = vmatpush.msra.mxu0 0.0
    %v482 = vand.u32 %v57, 4294901760
    %v483 = vsub.f32 %v57, %v482
    %v484 = vand.u32 %v483, 4294901760
    %485 = vmatpush.msra.mxu0 %v484
    %v486 = vand.u32 %v54, 4294901760
    %v487 = vsub.f32 %v54, %v486
    %v488 = vand.u32 %v487, 4294901760
    %489 = vmatpush.msra.mxu0 %v488
    %v490 = vand.u32 %v51, 4294901760
    %v491 = vsub.f32 %v51, %v490
    %v492 = vand.u32 %v491, 4294901760
    %493 = vmatpush.msra.mxu0 %v492
    %v494 = vand.u32 %v48, 4294901760
    %v495 = vsub.f32 %v48, %v494
    %v496 = vand.u32 %v495, 4294901760
    %497 = vmatpush.msra.mxu0 %v496
    %v498 = vand.u32 %v159, 4294901760
    %499 = vmatmul.f32.gmra.mxu0 %v498
    %v500 = vpop.f32.mrf.mxu0
    %v501 = vadd.f32 %v426, %v500
    %v502 = vand.u32 %v162, 4294901760
    %503 = vmatmul.f32.gmra.mxu0 %v502
    %v504 = vpop.f32.mrf.mxu0
    %v505 = vadd.f32 %v432, %v504
    %v506 = vand.u32 %v165, 4294901760
    %507 = vmatmul.f32.gmra.mxu0 %v506
    %v508 = vpop.f32.mrf.mxu0
    %v509 = vadd.f32 %v438, %v508
    %v510 = vand.u32 %v168, 4294901760
    %511 = vmatmul.f32.gmra.mxu0 %v510
    %v512 = vpop.f32.mrf.mxu0
    %v513 = vadd.f32 %v444, %v512
    %v514 = vand.u32 %v171, 4294901760
    %515 = vmatmul.f32.gmra.mxu0 %v514
    %v516 = vpop.f32.mrf.mxu0
    %v517 = vadd.f32 %v450, %v516
    %v518 = vand.u32 %v174, 4294901760
    %519 = vmatmul.f32.gmra.mxu0 %v518
    %v520 = vpop.f32.mrf.mxu0
    %v521 = vadd.f32 %v456, %v520
    %v522 = vand.u32 %v177, 4294901760
    %523 = vmatmul.f32.gmra.mxu0 %v522
    %v524 = vpop.f32.mrf.mxu0
    %v525 = vadd.f32 %v462, %v524
    %v526 = vand.u32 %v180, 4294901760
    %527 = vmatmul.f32.gmra.mxu0 %v526
    %v528 = vpop.f32.mrf.mxu0
    %v529 = vadd.f32 %v468, %v528
    %530 = vdwg.mxu0
    %531 = vmatpush.msra.mxu0 0.0
    %532 = vmatpush.msra.mxu0 0.0
    %533 = vmatpush.msra.mxu0 0.0
    %534 = vmatpush.msra.mxu0 0.0
    %535 = vmatpush.msra.mxu0 0.0
    %536 = vmatpush.msra.mxu0 0.0
    %537 = vmatpush.msra.mxu0 0.0
    %538 = vmatpush.msra.mxu0 0.0
    %539 = vmatpush.msra.mxu0 0.0
    %540 = vmatpush.msra.mxu0 0.0
    %541 = vmatpush.msra.mxu0 0.0
    %542 = vmatpush.msra.mxu0 0.0
    %v543 = vand.u32 %v57, 4294901760
    %544 = vmatpush.msra.mxu0 %v543
    %v545 = vand.u32 %v54, 4294901760
    %546 = vmatpush.msra.mxu0 %v545
    %v547 = vand.u32 %v51, 4294901760
    %548 = vmatpush.msra.mxu0 %v547
    %v549 = vand.u32 %v48, 4294901760
    %550 = vmatpush.msra.mxu0 %v549
    %v551 = vand.u32 %v159, 4294901760
    %552 = vmatmul.f32.gmra.mxu0 %v551
    %v553 = vpop.f32.mrf.mxu0
    %v554 = vadd.f32 %v501, %v553
    %v555 = vand.u32 %v162, 4294901760
    %556 = vmatmul.f32.gmra.mxu0 %v555
    %v557 = vpop.f32.mrf.mxu0
    %v558 = vadd.f32 %v505, %v557
    %v559 = vand.u32 %v165, 4294901760
    %560 = vmatmul.f32.gmra.mxu0 %v559
    %v561 = vpop.f32.mrf.mxu0
    %v562 = vadd.f32 %v509, %v561
    %v563 = vand.u32 %v168, 4294901760
    %564 = vmatmul.f32.gmra.mxu0 %v563
    %v565 = vpop.f32.mrf.mxu0
    %v566 = vadd.f32 %v513, %v565
    %v567 = vand.u32 %v171, 4294901760
    %568 = vmatmul.f32.gmra.mxu0 %v567
    %v569 = vpop.f32.mrf.mxu0
    %v570 = vadd.f32 %v517, %v569
    %v571 = vand.u32 %v174, 4294901760
    %572 = vmatmul.f32.gmra.mxu0 %v571
    %v573 = vpop.f32.mrf.mxu0
    %v574 = vadd.f32 %v521, %v573
    %v575 = vand.u32 %v177, 4294901760
    %576 = vmatmul.f32.gmra.mxu0 %v575
    %v577 = vpop.f32.mrf.mxu0
    %v578 = vadd.f32 %v525, %v577
    %v579 = vand.u32 %v180, 4294901760
    %580 = vmatmul.f32.gmra.mxu0 %v579
    %v581 = vpop.f32.mrf.mxu0
    %v582 = vadd.f32 %v529, %v581
    %583 = vdwg.mxu0
    %584 = vmatpush.msra.mxu0 0.0
    %585 = vmatpush.msra.mxu0 0.0
    %586 = vmatpush.msra.mxu0 0.0
    %587 = vmatpush.msra.mxu0 0.0
    %588 = vmatpush.msra.mxu0 0.0
    %589 = vmatpush.msra.mxu0 0.0
    %590 = vmatpush.msra.mxu0 0.0
    %591 = vmatpush.msra.mxu0 0.0
    %592 = vmatpush.msra.mxu0 0.0
    %593 = vmatpush.msra.mxu0 0.0
    %594 = vmatpush.msra.mxu0 0.0
    %595 = vmatpush.msra.mxu0 0.0
    %v596 = vand.u32 %v58, 4294901760
    %597 = vmatpush.msra.mxu0 %v596
    %v598 = vand.u32 %v55, 4294901760
    %599 = vmatpush.msra.mxu0 %v598
    %v600 = vand.u32 %v52, 4294901760
    %601 = vmatpush.msra.mxu0 %v600
    %v602 = vand.u32 %v49, 4294901760
    %603 = vmatpush.msra.mxu0 %v602
    %v604 = vand.u32 %v159, 4294901760
    %v605 = vsub.f32 %v159, %v604
    %v606 = vand.u32 %v605, 4294901760
    %v607 = vsub.f32 %v605, %v606
    %v608 = vand.u32 %v607, 4294901760
    %609 = vmatmul.f32.gmra.mxu0 %v608
    %v610 = vpop.f32.mrf.mxu0
    %v611 = vadd.f32 0.0, %v610
    %v612 = vand.u32 %v162, 4294901760
    %v613 = vsub.f32 %v162, %v612
    %v614 = vand.u32 %v613, 4294901760
    %v615 = vsub.f32 %v613, %v614
    %v616 = vand.u32 %v615, 4294901760
    %617 = vmatmul.f32.gmra.mxu0 %v616
    %v618 = vpop.f32.mrf.mxu0
    %v619 = vadd.f32 0.0, %v618
    %v620 = vand.u32 %v165, 4294901760
    %v621 = vsub.f32 %v165, %v620
    %v622 = vand.u32 %v621, 4294901760
    %v623 = vsub.f32 %v621, %v622
    %v624 = vand.u32 %v623, 4294901760
    %625 = vmatmul.f32.gmra.mxu0 %v624
    %v626 = vpop.f32.mrf.mxu0
    %v627 = vadd.f32 0.0, %v626
    %v628 = vand.u32 %v168, 4294901760
    %v629 = vsub.f32 %v168, %v628
    %v630 = vand.u32 %v629, 4294901760
    %v631 = vsub.f32 %v629, %v630
    %v632 = vand.u32 %v631, 4294901760
    %633 = vmatmul.f32.gmra.mxu0 %v632
    %v634 = vpop.f32.mrf.mxu0
    %v635 = vadd.f32 0.0, %v634
    %v636 = vand.u32 %v171, 4294901760
    %v637 = vsub.f32 %v171, %v636
    %v638 = vand.u32 %v637, 4294901760
    %v639 = vsub.f32 %v637, %v638
    %v640 = vand.u32 %v639, 4294901760
    %641 = vmatmul.f32.gmra.mxu0 %v640
    %v642 = vpop.f32.mrf.mxu0
    %v643 = vadd.f32 0.0, %v642
    %v644 = vand.u32 %v174, 4294901760
    %v645 = vsub.f32 %v174, %v644
    %v646 = vand.u32 %v645, 4294901760
    %v647 = vsub.f32 %v645, %v646
    %v648 = vand.u32 %v647, 4294901760
    %649 = vmatmul.f32.gmra.mxu0 %v648
    %v650 = vpop.f32.mrf.mxu0
    %v651 = vadd.f32 0.0, %v650
    %v652 = vand.u32 %v177, 4294901760
    %v653 = vsub.f32 %v177, %v652
    %v654 = vand.u32 %v653, 4294901760
    %v655 = vsub.f32 %v653, %v654
    %v656 = vand.u32 %v655, 4294901760
    %657 = vmatmul.f32.gmra.mxu0 %v656
    %v658 = vpop.f32.mrf.mxu0
    %v659 = vadd.f32 0.0, %v658
    %v660 = vand.u32 %v180, 4294901760
    %v661 = vsub.f32 %v180, %v660
    %v662 = vand.u32 %v661, 4294901760
    %v663 = vsub.f32 %v661, %v662
    %v664 = vand.u32 %v663, 4294901760
    %665 = vmatmul.f32.gmra.mxu0 %v664
    %v666 = vpop.f32.mrf.mxu0
    %v667 = vadd.f32 0.0, %v666
    %668 = vdwg.mxu0
    %669 = vmatpush.msra.mxu0 0.0
    %670 = vmatpush.msra.mxu0 0.0
    %671 = vmatpush.msra.mxu0 0.0
    %672 = vmatpush.msra.mxu0 0.0
    %673 = vmatpush.msra.mxu0 0.0
    %674 = vmatpush.msra.mxu0 0.0
    %675 = vmatpush.msra.mxu0 0.0
    %676 = vmatpush.msra.mxu0 0.0
    %677 = vmatpush.msra.mxu0 0.0
    %678 = vmatpush.msra.mxu0 0.0
    %679 = vmatpush.msra.mxu0 0.0
    %680 = vmatpush.msra.mxu0 0.0
    %v681 = vand.u32 %v58, 4294901760
    %v682 = vsub.f32 %v58, %v681
    %v683 = vand.u32 %v682, 4294901760
    %v684 = vsub.f32 %v682, %v683
    %v685 = vand.u32 %v684, 4294901760
    %686 = vmatpush.msra.mxu0 %v685
    %v687 = vand.u32 %v55, 4294901760
    %v688 = vsub.f32 %v55, %v687
    %v689 = vand.u32 %v688, 4294901760
    %v690 = vsub.f32 %v688, %v689
    %v691 = vand.u32 %v690, 4294901760
    %692 = vmatpush.msra.mxu0 %v691
    %v693 = vand.u32 %v52, 4294901760
    %v694 = vsub.f32 %v52, %v693
    %v695 = vand.u32 %v694, 4294901760
    %v696 = vsub.f32 %v694, %v695
    %v697 = vand.u32 %v696, 4294901760
    %698 = vmatpush.msra.mxu0 %v697
    %v699 = vand.u32 %v49, 4294901760
    %v700 = vsub.f32 %v49, %v699
    %v701 = vand.u32 %v700, 4294901760
    %v702 = vsub.f32 %v700, %v701
    %v703 = vand.u32 %v702, 4294901760
    %704 = vmatpush.msra.mxu0 %v703
    %v705 = vand.u32 %v159, 4294901760
    %706 = vmatmul.f32.gmra.mxu0 %v705
    %v707 = vpop.f32.mrf.mxu0
    %v708 = vadd.f32 %v611, %v707
    %v709 = vand.u32 %v162, 4294901760
    %710 = vmatmul.f32.gmra.mxu0 %v709
    %v711 = vpop.f32.mrf.mxu0
    %v712 = vadd.f32 %v619, %v711
    %v713 = vand.u32 %v165, 4294901760
    %714 = vmatmul.f32.gmra.mxu0 %v713
    %v715 = vpop.f32.mrf.mxu0
    %v716 = vadd.f32 %v627, %v715
    %v717 = vand.u32 %v168, 4294901760
    %718 = vmatmul.f32.gmra.mxu0 %v717
    %v719 = vpop.f32.mrf.mxu0
    %v720 = vadd.f32 %v635, %v719
    %v721 = vand.u32 %v171, 4294901760
    %722 = vmatmul.f32.gmra.mxu0 %v721
    %v723 = vpop.f32.mrf.mxu0
    %v724 = vadd.f32 %v643, %v723
    %v725 = vand.u32 %v174, 4294901760
    %726 = vmatmul.f32.gmra.mxu0 %v725
    %v727 = vpop.f32.mrf.mxu0
    %v728 = vadd.f32 %v651, %v727
    %v729 = vand.u32 %v177, 4294901760
    %730 = vmatmul.f32.gmra.mxu0 %v729
    %v731 = vpop.f32.mrf.mxu0
    %v732 = vadd.f32 %v659, %v731
    %v733 = vand.u32 %v180, 4294901760
    %734 = vmatmul.f32.gmra.mxu0 %v733
    %v735 = vpop.f32.mrf.mxu0
    %v736 = vadd.f32 %v667, %v735
    %737 = vdwg.mxu0
    %738 = vmatpush.msra.mxu0 0.0
    %739 = vmatpush.msra.mxu0 0.0
    %740 = vmatpush.msra.mxu0 0.0
    %741 = vmatpush.msra.mxu0 0.0
    %742 = vmatpush.msra.mxu0 0.0
    %743 = vmatpush.msra.mxu0 0.0
    %744 = vmatpush.msra.mxu0 0.0
    %745 = vmatpush.msra.mxu0 0.0
    %746 = vmatpush.msra.mxu0 0.0
    %747 = vmatpush.msra.mxu0 0.0
    %748 = vmatpush.msra.mxu0 0.0
    %749 = vmatpush.msra.mxu0 0.0
    %v750 = vand.u32 %v58, 4294901760
    %v751 = vsub.f32 %v58, %v750
    %752 = vmatpush.msra.mxu0 %v751
    %v753 = vand.u32 %v55, 4294901760
    %v754 = vsub.f32 %v55, %v753
    %755 = vmatpush.msra.mxu0 %v754
    %v756 = vand.u32 %v52, 4294901760
    %v757 = vsub.f32 %v52, %v756
    %758 = vmatpush.msra.mxu0 %v757
    %v759 = vand.u32 %v49, 4294901760
    %v760 = vsub.f32 %v49, %v759
    %761 = vmatpush.msra.mxu0 %v760
    %v762 = vand.u32 %v159, 4294901760
    %v763 = vsub.f32 %v159, %v762
    %764 = vmatmul.f32.gmra.mxu0 %v763
    %v765 = vpop.f32.mrf.mxu0
    %v766 = vadd.f32 %v708, %v765
    %v767 = vand.u32 %v162, 4294901760
    %v768 = vsub.f32 %v162, %v767
    %769 = vmatmul.f32.gmra.mxu0 %v768
    %v770 = vpop.f32.mrf.mxu0
    %v771 = vadd.f32 %v712, %v770
    %v772 = vand.u32 %v165, 4294901760
    %v773 = vsub.f32 %v165, %v772
    %774 = vmatmul.f32.gmra.mxu0 %v773
    %v775 = vpop.f32.mrf.mxu0
    %v776 = vadd.f32 %v716, %v775
    %v777 = vand.u32 %v168, 4294901760
    %v778 = vsub.f32 %v168, %v777
    %779 = vmatmul.f32.gmra.mxu0 %v778
    %v780 = vpop.f32.mrf.mxu0
    %v781 = vadd.f32 %v720, %v780
    %v782 = vand.u32 %v171, 4294901760
    %v783 = vsub.f32 %v171, %v782
    %784 = vmatmul.f32.gmra.mxu0 %v783
    %v785 = vpop.f32.mrf.mxu0
    %v786 = vadd.f32 %v724, %v785
    %v787 = vand.u32 %v174, 4294901760
    %v788 = vsub.f32 %v174, %v787
    %789 = vmatmul.f32.gmra.mxu0 %v788
    %v790 = vpop.f32.mrf.mxu0
    %v791 = vadd.f32 %v728, %v790
    %v792 = vand.u32 %v177, 4294901760
    %v793 = vsub.f32 %v177, %v792
    %794 = vmatmul.f32.gmra.mxu0 %v793
    %v795 = vpop.f32.mrf.mxu0
    %v796 = vadd.f32 %v732, %v795
    %v797 = vand.u32 %v180, 4294901760
    %v798 = vsub.f32 %v180, %v797
    %799 = vmatmul.f32.gmra.mxu0 %v798
    %v800 = vpop.f32.mrf.mxu0
    %v801 = vadd.f32 %v736, %v800
    %802 = vdwg.mxu0
    %803 = vmatpush.msra.mxu0 0.0
    %804 = vmatpush.msra.mxu0 0.0
    %805 = vmatpush.msra.mxu0 0.0
    %806 = vmatpush.msra.mxu0 0.0
    %807 = vmatpush.msra.mxu0 0.0
    %808 = vmatpush.msra.mxu0 0.0
    %809 = vmatpush.msra.mxu0 0.0
    %810 = vmatpush.msra.mxu0 0.0
    %811 = vmatpush.msra.mxu0 0.0
    %812 = vmatpush.msra.mxu0 0.0
    %813 = vmatpush.msra.mxu0 0.0
    %814 = vmatpush.msra.mxu0 0.0
    %v815 = vand.u32 %v58, 4294901760
    %816 = vmatpush.msra.mxu0 %v815
    %v817 = vand.u32 %v55, 4294901760
    %818 = vmatpush.msra.mxu0 %v817
    %v819 = vand.u32 %v52, 4294901760
    %820 = vmatpush.msra.mxu0 %v819
    %v821 = vand.u32 %v49, 4294901760
    %822 = vmatpush.msra.mxu0 %v821
    %v823 = vand.u32 %v159, 4294901760
    %v824 = vsub.f32 %v159, %v823
    %v825 = vand.u32 %v824, 4294901760
    %826 = vmatmul.f32.gmra.mxu0 %v825
    %v827 = vpop.f32.mrf.mxu0
    %v828 = vadd.f32 %v766, %v827
    %v829 = vand.u32 %v162, 4294901760
    %v830 = vsub.f32 %v162, %v829
    %v831 = vand.u32 %v830, 4294901760
    %832 = vmatmul.f32.gmra.mxu0 %v831
    %v833 = vpop.f32.mrf.mxu0
    %v834 = vadd.f32 %v771, %v833
    %v835 = vand.u32 %v165, 4294901760
    %v836 = vsub.f32 %v165, %v835
    %v837 = vand.u32 %v836, 4294901760
    %838 = vmatmul.f32.gmra.mxu0 %v837
    %v839 = vpop.f32.mrf.mxu0
    %v840 = vadd.f32 %v776, %v839
    %v841 = vand.u32 %v168, 4294901760
    %v842 = vsub.f32 %v168, %v841
    %v843 = vand.u32 %v842, 4294901760
    %844 = vmatmul.f32.gmra.mxu0 %v843
    %v845 = vpop.f32.mrf.mxu0
    %v846 = vadd.f32 %v781, %v845
    %v847 = vand.u32 %v171, 4294901760
    %v848 = vsub.f32 %v171, %v847
    %v849 = vand.u32 %v848, 4294901760
    %850 = vmatmul.f32.gmra.mxu0 %v849
    %v851 = vpop.f32.mrf.mxu0
    %v852 = vadd.f32 %v786, %v851
    %v853 = vand.u32 %v174, 4294901760
    %v854 = vsub.f32 %v174, %v853
    %v855 = vand.u32 %v854, 4294901760
    %856 = vmatmul.f32.gmra.mxu0 %v855
    %v857 = vpop.f32.mrf.mxu0
    %v858 = vadd.f32 %v791, %v857
    %v859 = vand.u32 %v177, 4294901760
    %v860 = vsub.f32 %v177, %v859
    %v861 = vand.u32 %v860, 4294901760
    %862 = vmatmul.f32.gmra.mxu0 %v861
    %v863 = vpop.f32.mrf.mxu0
    %v864 = vadd.f32 %v796, %v863
    %v865 = vand.u32 %v180, 4294901760
    %v866 = vsub.f32 %v180, %v865
    %v867 = vand.u32 %v866, 4294901760
    %868 = vmatmul.f32.gmra.mxu0 %v867
    %v869 = vpop.f32.mrf.mxu0
    %v870 = vadd.f32 %v801, %v869
    %871 = vdwg.mxu0
    %872 = vmatpush.msra.mxu0 0.0
    %873 = vmatpush.msra.mxu0 0.0
    %874 = vmatpush.msra.mxu0 0.0
    %875 = vmatpush.msra.mxu0 0.0
    %876 = vmatpush.msra.mxu0 0.0
    %877 = vmatpush.msra.mxu0 0.0
    %878 = vmatpush.msra.mxu0 0.0
    %879 = vmatpush.msra.mxu0 0.0
    %880 = vmatpush.msra.mxu0 0.0
    %881 = vmatpush.msra.mxu0 0.0
    %882 = vmatpush.msra.mxu0 0.0
    %883 = vmatpush.msra.mxu0 0.0
    %v884 = vand.u32 %v58, 4294901760
    %v885 = vsub.f32 %v58, %v884
    %v886 = vand.u32 %v885, 4294901760
    %887 = vmatpush.msra.mxu0 %v886
    %v888 = vand.u32 %v55, 4294901760
    %v889 = vsub.f32 %v55, %v888
    %v890 = vand.u32 %v889, 4294901760
    %891 = vmatpush.msra.mxu0 %v890
    %v892 = vand.u32 %v52, 4294901760
    %v893 = vsub.f32 %v52, %v892
    %v894 = vand.u32 %v893, 4294901760
    %895 = vmatpush.msra.mxu0 %v894
    %v896 = vand.u32 %v49, 4294901760
    %v897 = vsub.f32 %v49, %v896
    %v898 = vand.u32 %v897, 4294901760
    %899 = vmatpush.msra.mxu0 %v898
    %v900 = vand.u32 %v159, 4294901760
    %901 = vmatmul.f32.gmra.mxu0 %v900
    %v902 = vpop.f32.mrf.mxu0
    %v903 = vadd.f32 %v828, %v902
    %v904 = vand.u32 %v162, 4294901760
    %905 = vmatmul.f32.gmra.mxu0 %v904
    %v906 = vpop.f32.mrf.mxu0
    %v907 = vadd.f32 %v834, %v906
    %v908 = vand.u32 %v165, 4294901760
    %909 = vmatmul.f32.gmra.mxu0 %v908
    %v910 = vpop.f32.mrf.mxu0
    %v911 = vadd.f32 %v840, %v910
    %v912 = vand.u32 %v168, 4294901760
    %913 = vmatmul.f32.gmra.mxu0 %v912
    %v914 = vpop.f32.mrf.mxu0
    %v915 = vadd.f32 %v846, %v914
    %v916 = vand.u32 %v171, 4294901760
    %917 = vmatmul.f32.gmra.mxu0 %v916
    %v918 = vpop.f32.mrf.mxu0
    %v919 = vadd.f32 %v852, %v918
    %v920 = vand.u32 %v174, 4294901760
    %921 = vmatmul.f32.gmra.mxu0 %v920
    %v922 = vpop.f32.mrf.mxu0
    %v923 = vadd.f32 %v858, %v922
    %v924 = vand.u32 %v177, 4294901760
    %925 = vmatmul.f32.gmra.mxu0 %v924
    %v926 = vpop.f32.mrf.mxu0
    %v927 = vadd.f32 %v864, %v926
    %v928 = vand.u32 %v180, 4294901760
    %929 = vmatmul.f32.gmra.mxu0 %v928
    %v930 = vpop.f32.mrf.mxu0
    %v931 = vadd.f32 %v870, %v930
    %932 = vdwg.mxu0
    %933 = vmatpush.msra.mxu0 0.0
    %934 = vmatpush.msra.mxu0 0.0
    %935 = vmatpush.msra.mxu0 0.0
    %936 = vmatpush.msra.mxu0 0.0
    %937 = vmatpush.msra.mxu0 0.0
    %938 = vmatpush.msra.mxu0 0.0
    %939 = vmatpush.msra.mxu0 0.0
    %940 = vmatpush.msra.mxu0 0.0
    %941 = vmatpush.msra.mxu0 0.0
    %942 = vmatpush.msra.mxu0 0.0
    %943 = vmatpush.msra.mxu0 0.0
    %944 = vmatpush.msra.mxu0 0.0
    %v945 = vand.u32 %v58, 4294901760
    %946 = vmatpush.msra.mxu0 %v945
    %v947 = vand.u32 %v55, 4294901760
    %948 = vmatpush.msra.mxu0 %v947
    %v949 = vand.u32 %v52, 4294901760
    %950 = vmatpush.msra.mxu0 %v949
    %v951 = vand.u32 %v49, 4294901760
    %952 = vmatpush.msra.mxu0 %v951
    %v953 = vand.u32 %v159, 4294901760
    %954 = vmatmul.f32.gmra.mxu0 %v953
    %v955 = vpop.f32.mrf.mxu0
    %v956 = vadd.f32 %v903, %v955
    %v957 = vand.u32 %v162, 4294901760
    %958 = vmatmul.f32.gmra.mxu0 %v957
    %v959 = vpop.f32.mrf.mxu0
    %v960 = vadd.f32 %v907, %v959
    %v961 = vand.u32 %v165, 4294901760
    %962 = vmatmul.f32.gmra.mxu0 %v961
    %v963 = vpop.f32.mrf.mxu0
    %v964 = vadd.f32 %v911, %v963
    %v965 = vand.u32 %v168, 4294901760
    %966 = vmatmul.f32.gmra.mxu0 %v965
    %v967 = vpop.f32.mrf.mxu0
    %v968 = vadd.f32 %v915, %v967
    %v969 = vand.u32 %v171, 4294901760
    %970 = vmatmul.f32.gmra.mxu0 %v969
    %v971 = vpop.f32.mrf.mxu0
    %v972 = vadd.f32 %v919, %v971
    %v973 = vand.u32 %v174, 4294901760
    %974 = vmatmul.f32.gmra.mxu0 %v973
    %v975 = vpop.f32.mrf.mxu0
    %v976 = vadd.f32 %v923, %v975
    %v977 = vand.u32 %v177, 4294901760
    %978 = vmatmul.f32.gmra.mxu0 %v977
    %v979 = vpop.f32.mrf.mxu0
    %v980 = vadd.f32 %v927, %v979
    %v981 = vand.u32 %v180, 4294901760
    %982 = vmatmul.f32.gmra.mxu0 %v981
    %v983 = vpop.f32.mrf.mxu0
    %v984 = vadd.f32 %v931, %v983
    %985 = vdwg.mxu0
    %986 = vmatpush.msra.mxu0 0.0
    %987 = vmatpush.msra.mxu0 0.0
    %988 = vmatpush.msra.mxu0 0.0
    %989 = vmatpush.msra.mxu0 0.0
    %990 = vmatpush.msra.mxu0 0.0
    %991 = vmatpush.msra.mxu0 0.0
    %992 = vmatpush.msra.mxu0 0.0
    %993 = vmatpush.msra.mxu0 0.0
    %994 = vmatpush.msra.mxu0 0.0
    %995 = vmatpush.msra.mxu0 0.0
    %996 = vmatpush.msra.mxu0 0.0
    %997 = vmatpush.msra.mxu0 0.0
    %v998 = vand.u32 %v59, 4294901760
    %999 = vmatpush.msra.mxu0 %v998
    %v1000 = vand.u32 %v56, 4294901760
    %1001 = vmatpush.msra.mxu0 %v1000
    %v1002 = vand.u32 %v53, 4294901760
    %1003 = vmatpush.msra.mxu0 %v1002
    %v1004 = vand.u32 %v50, 4294901760
    %1005 = vmatpush.msra.mxu0 %v1004
    %v1006 = vand.u32 %v159, 4294901760
    %v1007 = vsub.f32 %v159, %v1006
    %v1008 = vand.u32 %v1007, 4294901760
    %v1009 = vsub.f32 %v1007, %v1008
    %v1010 = vand.u32 %v1009, 4294901760
    %1011 = vmatmul.f32.gmra.mxu0 %v1010
    %v1012 = vpop.f32.mrf.mxu0
    %v1013 = vadd.f32 0.0, %v1012
    %v1014 = vand.u32 %v162, 4294901760
    %v1015 = vsub.f32 %v162, %v1014
    %v1016 = vand.u32 %v1015, 4294901760
    %v1017 = vsub.f32 %v1015, %v1016
    %v1018 = vand.u32 %v1017, 4294901760
    %1019 = vmatmul.f32.gmra.mxu0 %v1018
    %v1020 = vpop.f32.mrf.mxu0
    %v1021 = vadd.f32 0.0, %v1020
    %v1022 = vand.u32 %v165, 4294901760
    %v1023 = vsub.f32 %v165, %v1022
    %v1024 = vand.u32 %v1023, 4294901760
    %v1025 = vsub.f32 %v1023, %v1024
    %v1026 = vand.u32 %v1025, 4294901760
    %1027 = vmatmul.f32.gmra.mxu0 %v1026
    %v1028 = vpop.f32.mrf.mxu0
    %v1029 = vadd.f32 0.0, %v1028
    %v1030 = vand.u32 %v168, 4294901760
    %v1031 = vsub.f32 %v168, %v1030
    %v1032 = vand.u32 %v1031, 4294901760
    %v1033 = vsub.f32 %v1031, %v1032
    %v1034 = vand.u32 %v1033, 4294901760
    %1035 = vmatmul.f32.gmra.mxu0 %v1034
    %v1036 = vpop.f32.mrf.mxu0
    %v1037 = vadd.f32 0.0, %v1036
    %v1038 = vand.u32 %v171, 4294901760
    %v1039 = vsub.f32 %v171, %v1038
    %v1040 = vand.u32 %v1039, 4294901760
    %v1041 = vsub.f32 %v1039, %v1040
    %v1042 = vand.u32 %v1041, 4294901760
    %1043 = vmatmul.f32.gmra.mxu0 %v1042
    %v1044 = vpop.f32.mrf.mxu0
    %v1045 = vadd.f32 0.0, %v1044
    %v1046 = vand.u32 %v174, 4294901760
    %v1047 = vsub.f32 %v174, %v1046
    %v1048 = vand.u32 %v1047, 4294901760
    %v1049 = vsub.f32 %v1047, %v1048
    %v1050 = vand.u32 %v1049, 4294901760
    %1051 = vmatmul.f32.gmra.mxu0 %v1050
    %v1052 = vpop.f32.mrf.mxu0
    %v1053 = vadd.f32 0.0, %v1052
    %v1054 = vand.u32 %v177, 4294901760
    %v1055 = vsub.f32 %v177, %v1054
    %v1056 = vand.u32 %v1055, 4294901760
    %v1057 = vsub.f32 %v1055, %v1056
    %v1058 = vand.u32 %v1057, 4294901760
    %1059 = vmatmul.f32.gmra.mxu0 %v1058
    %v1060 = vpop.f32.mrf.mxu0
    %v1061 = vadd.f32 0.0, %v1060
    %v1062 = vand.u32 %v180, 4294901760
    %v1063 = vsub.f32 %v180, %v1062
    %v1064 = vand.u32 %v1063, 4294901760
    %v1065 = vsub.f32 %v1063, %v1064
    %v1066 = vand.u32 %v1065, 4294901760
    %1067 = vmatmul.f32.gmra.mxu0 %v1066
    %v1068 = vpop.f32.mrf.mxu0
    %v1069 = vadd.f32 0.0, %v1068
    %1070 = vdwg.mxu0
    %1071 = vmatpush.msra.mxu0 0.0
    %1072 = vmatpush.msra.mxu0 0.0
    %1073 = vmatpush.msra.mxu0 0.0
    %1074 = vmatpush.msra.mxu0 0.0
    %1075 = vmatpush.msra.mxu0 0.0
    %1076 = vmatpush.msra.mxu0 0.0
    %1077 = vmatpush.msra.mxu0 0.0
    %1078 = vmatpush.msra.mxu0 0.0
    %1079 = vmatpush.msra.mxu0 0.0
    %1080 = vmatpush.msra.mxu0 0.0
    %1081 = vmatpush.msra.mxu0 0.0
    %1082 = vmatpush.msra.mxu0 0.0
    %v1083 = vand.u32 %v59, 4294901760
    %v1084 = vsub.f32 %v59, %v1083
    %v1085 = vand.u32 %v1084, 4294901760
    %v1086 = vsub.f32 %v1084, %v1085
    %v1087 = vand.u32 %v1086, 4294901760
    %1088 = vmatpush.msra.mxu0 %v1087
    %v1089 = vand.u32 %v56, 4294901760
    %v1090 = vsub.f32 %v56, %v1089
    %v1091 = vand.u32 %v1090, 4294901760
    %v1092 = vsub.f32 %v1090, %v1091
    %v1093 = vand.u32 %v1092, 4294901760
    %1094 = vmatpush.msra.mxu0 %v1093
    %v1095 = vand.u32 %v53, 4294901760
    %v1096 = vsub.f32 %v53, %v1095
    %v1097 = vand.u32 %v1096, 4294901760
    %v1098 = vsub.f32 %v1096, %v1097
    %v1099 = vand.u32 %v1098, 4294901760
    %1100 = vmatpush.msra.mxu0 %v1099
    %v1101 = vand.u32 %v50, 4294901760
    %v1102 = vsub.f32 %v50, %v1101
    %v1103 = vand.u32 %v1102, 4294901760
    %v1104 = vsub.f32 %v1102, %v1103
    %v1105 = vand.u32 %v1104, 4294901760
    %1106 = vmatpush.msra.mxu0 %v1105
    %v1107 = vand.u32 %v159, 4294901760
    %1108 = vmatmul.f32.gmra.mxu0 %v1107
    %v1109 = vpop.f32.mrf.mxu0
    %v1110 = vadd.f32 %v1013, %v1109
    %v1111 = vand.u32 %v162, 4294901760
    %1112 = vmatmul.f32.gmra.mxu0 %v1111
    %v1113 = vpop.f32.mrf.mxu0
    %v1114 = vadd.f32 %v1021, %v1113
    %v1115 = vand.u32 %v165, 4294901760
    %1116 = vmatmul.f32.gmra.mxu0 %v1115
    %v1117 = vpop.f32.mrf.mxu0
    %v1118 = vadd.f32 %v1029, %v1117
    %v1119 = vand.u32 %v168, 4294901760
    %1120 = vmatmul.f32.gmra.mxu0 %v1119
    %v1121 = vpop.f32.mrf.mxu0
    %v1122 = vadd.f32 %v1037, %v1121
    %v1123 = vand.u32 %v171, 4294901760
    %1124 = vmatmul.f32.gmra.mxu0 %v1123
    %v1125 = vpop.f32.mrf.mxu0
    %v1126 = vadd.f32 %v1045, %v1125
    %v1127 = vand.u32 %v174, 4294901760
    %1128 = vmatmul.f32.gmra.mxu0 %v1127
    %v1129 = vpop.f32.mrf.mxu0
    %v1130 = vadd.f32 %v1053, %v1129
    %v1131 = vand.u32 %v177, 4294901760
    %1132 = vmatmul.f32.gmra.mxu0 %v1131
    %v1133 = vpop.f32.mrf.mxu0
    %v1134 = vadd.f32 %v1061, %v1133
    %v1135 = vand.u32 %v180, 4294901760
    %1136 = vmatmul.f32.gmra.mxu0 %v1135
    %v1137 = vpop.f32.mrf.mxu0
    %v1138 = vadd.f32 %v1069, %v1137
    %1139 = vdwg.mxu0
    %1140 = vmatpush.msra.mxu0 0.0
    %1141 = vmatpush.msra.mxu0 0.0
    %1142 = vmatpush.msra.mxu0 0.0
    %1143 = vmatpush.msra.mxu0 0.0
    %1144 = vmatpush.msra.mxu0 0.0
    %1145 = vmatpush.msra.mxu0 0.0
    %1146 = vmatpush.msra.mxu0 0.0
    %1147 = vmatpush.msra.mxu0 0.0
    %1148 = vmatpush.msra.mxu0 0.0
    %1149 = vmatpush.msra.mxu0 0.0
    %1150 = vmatpush.msra.mxu0 0.0
    %1151 = vmatpush.msra.mxu0 0.0
    %v1152 = vand.u32 %v59, 4294901760
    %v1153 = vsub.f32 %v59, %v1152
    %1154 = vmatpush.msra.mxu0 %v1153
    %v1155 = vand.u32 %v56, 4294901760
    %v1156 = vsub.f32 %v56, %v1155
    %1157 = vmatpush.msra.mxu0 %v1156
    %v1158 = vand.u32 %v53, 4294901760
    %v1159 = vsub.f32 %v53, %v1158
    %1160 = vmatpush.msra.mxu0 %v1159
    %v1161 = vand.u32 %v50, 4294901760
    %v1162 = vsub.f32 %v50, %v1161
    %1163 = vmatpush.msra.mxu0 %v1162
    %v1164 = vand.u32 %v159, 4294901760
    %v1165 = vsub.f32 %v159, %v1164
    %1166 = vmatmul.f32.gmra.mxu0 %v1165
    %v1167 = vpop.f32.mrf.mxu0
    %v1168 = vadd.f32 %v1110, %v1167
    %v1169 = vand.u32 %v162, 4294901760
    %v1170 = vsub.f32 %v162, %v1169
    %1171 = vmatmul.f32.gmra.mxu0 %v1170
    %v1172 = vpop.f32.mrf.mxu0
    %v1173 = vadd.f32 %v1114, %v1172
    %v1174 = vand.u32 %v165, 4294901760
    %v1175 = vsub.f32 %v165, %v1174
    %1176 = vmatmul.f32.gmra.mxu0 %v1175
    %v1177 = vpop.f32.mrf.mxu0
    %v1178 = vadd.f32 %v1118, %v1177
    %v1179 = vand.u32 %v168, 4294901760
    %v1180 = vsub.f32 %v168, %v1179
    %1181 = vmatmul.f32.gmra.mxu0 %v1180
    %v1182 = vpop.f32.mrf.mxu0
    %v1183 = vadd.f32 %v1122, %v1182
    %v1184 = vand.u32 %v171, 4294901760
    %v1185 = vsub.f32 %v171, %v1184
    %1186 = vmatmul.f32.gmra.mxu0 %v1185
    %v1187 = vpop.f32.mrf.mxu0
    %v1188 = vadd.f32 %v1126, %v1187
    %v1189 = vand.u32 %v174, 4294901760
    %v1190 = vsub.f32 %v174, %v1189
    %1191 = vmatmul.f32.gmra.mxu0 %v1190
    %v1192 = vpop.f32.mrf.mxu0
    %v1193 = vadd.f32 %v1130, %v1192
    %v1194 = vand.u32 %v177, 4294901760
    %v1195 = vsub.f32 %v177, %v1194
    %1196 = vmatmul.f32.gmra.mxu0 %v1195
    %v1197 = vpop.f32.mrf.mxu0
    %v1198 = vadd.f32 %v1134, %v1197
    %v1199 = vand.u32 %v180, 4294901760
    %v1200 = vsub.f32 %v180, %v1199
    %1201 = vmatmul.f32.gmra.mxu0 %v1200
    %v1202 = vpop.f32.mrf.mxu0
    %v1203 = vadd.f32 %v1138, %v1202
    %1204 = vdwg.mxu0
    %1205 = vmatpush.msra.mxu0 0.0
    %1206 = vmatpush.msra.mxu0 0.0
    %1207 = vmatpush.msra.mxu0 0.0
    %1208 = vmatpush.msra.mxu0 0.0
    %1209 = vmatpush.msra.mxu0 0.0
    %1210 = vmatpush.msra.mxu0 0.0
    %1211 = vmatpush.msra.mxu0 0.0
    %1212 = vmatpush.msra.mxu0 0.0
    %1213 = vmatpush.msra.mxu0 0.0
    %1214 = vmatpush.msra.mxu0 0.0
    %1215 = vmatpush.msra.mxu0 0.0
    %1216 = vmatpush.msra.mxu0 0.0
    %v1217 = vand.u32 %v59, 4294901760
    %1218 = vmatpush.msra.mxu0 %v1217
    %v1219 = vand.u32 %v56, 4294901760
    %1220 = vmatpush.msra.mxu0 %v1219
    %v1221 = vand.u32 %v53, 4294901760
    %1222 = vmatpush.msra.mxu0 %v1221
    %v1223 = vand.u32 %v50, 4294901760
    %1224 = vmatpush.msra.mxu0 %v1223
    %v1225 = vand.u32 %v159, 4294901760
    %v1226 = vsub.f32 %v159, %v1225
    %v1227 = vand.u32 %v1226, 4294901760
    %1228 = vmatmul.f32.gmra.mxu0 %v1227
    %v1229 = vpop.f32.mrf.mxu0
    %v1230 = vadd.f32 %v1168, %v1229
    %v1231 = vand.u32 %v162, 4294901760
    %v1232 = vsub.f32 %v162, %v1231
    %v1233 = vand.u32 %v1232, 4294901760
    %1234 = vmatmul.f32.gmra.mxu0 %v1233
    %v1235 = vpop.f32.mrf.mxu0
    %v1236 = vadd.f32 %v1173, %v1235
    %v1237 = vand.u32 %v165, 4294901760
    %v1238 = vsub.f32 %v165, %v1237
    %v1239 = vand.u32 %v1238, 4294901760
    %1240 = vmatmul.f32.gmra.mxu0 %v1239
    %v1241 = vpop.f32.mrf.mxu0
    %v1242 = vadd.f32 %v1178, %v1241
    %v1243 = vand.u32 %v168, 4294901760
    %v1244 = vsub.f32 %v168, %v1243
    %v1245 = vand.u32 %v1244, 4294901760
    %1246 = vmatmul.f32.gmra.mxu0 %v1245
    %v1247 = vpop.f32.mrf.mxu0
    %v1248 = vadd.f32 %v1183, %v1247
    %v1249 = vand.u32 %v171, 4294901760
    %v1250 = vsub.f32 %v171, %v1249
    %v1251 = vand.u32 %v1250, 4294901760
    %1252 = vmatmul.f32.gmra.mxu0 %v1251
    %v1253 = vpop.f32.mrf.mxu0
    %v1254 = vadd.f32 %v1188, %v1253
    %v1255 = vand.u32 %v174, 4294901760
    %v1256 = vsub.f32 %v174, %v1255
    %v1257 = vand.u32 %v1256, 4294901760
    %1258 = vmatmul.f32.gmra.mxu0 %v1257
    %v1259 = vpop.f32.mrf.mxu0
    %v1260 = vadd.f32 %v1193, %v1259
    %v1261 = vand.u32 %v177, 4294901760
    %v1262 = vsub.f32 %v177, %v1261
    %v1263 = vand.u32 %v1262, 4294901760
    %1264 = vmatmul.f32.gmra.mxu0 %v1263
    %v1265 = vpop.f32.mrf.mxu0
    %v1266 = vadd.f32 %v1198, %v1265
    %v1267 = vand.u32 %v180, 4294901760
    %v1268 = vsub.f32 %v180, %v1267
    %v1269 = vand.u32 %v1268, 4294901760
    %1270 = vmatmul.f32.gmra.mxu0 %v1269
    %v1271 = vpop.f32.mrf.mxu0
    %v1272 = vadd.f32 %v1203, %v1271
    %1273 = vdwg.mxu0
    %1274 = vmatpush.msra.mxu0 0.0
    %1275 = vmatpush.msra.mxu0 0.0
    %1276 = vmatpush.msra.mxu0 0.0
    %1277 = vmatpush.msra.mxu0 0.0
    %1278 = vmatpush.msra.mxu0 0.0
    %1279 = vmatpush.msra.mxu0 0.0
    %1280 = vmatpush.msra.mxu0 0.0
    %1281 = vmatpush.msra.mxu0 0.0
    %1282 = vmatpush.msra.mxu0 0.0
    %1283 = vmatpush.msra.mxu0 0.0
    %1284 = vmatpush.msra.mxu0 0.0
    %1285 = vmatpush.msra.mxu0 0.0
    %v1286 = vand.u32 %v59, 4294901760
    %v1287 = vsub.f32 %v59, %v1286
    %v1288 = vand.u32 %v1287, 4294901760
    %1289 = vmatpush.msra.mxu0 %v1288
    %v1290 = vand.u32 %v56, 4294901760
    %v1291 = vsub.f32 %v56, %v1290
    %v1292 = vand.u32 %v1291, 4294901760
    %1293 = vmatpush.msra.mxu0 %v1292
    %v1294 = vand.u32 %v53, 4294901760
    %v1295 = vsub.f32 %v53, %v1294
    %v1296 = vand.u32 %v1295, 4294901760
    %1297 = vmatpush.msra.mxu0 %v1296
    %v1298 = vand.u32 %v50, 4294901760
    %v1299 = vsub.f32 %v50, %v1298
    %v1300 = vand.u32 %v1299, 4294901760
    %1301 = vmatpush.msra.mxu0 %v1300
    %v1302 = vand.u32 %v159, 4294901760
    %1303 = vmatmul.f32.gmra.mxu0 %v1302
    %v1304 = vpop.f32.mrf.mxu0
    %v1305 = vadd.f32 %v1230, %v1304
    %v1306 = vand.u32 %v162, 4294901760
    %1307 = vmatmul.f32.gmra.mxu0 %v1306
    %v1308 = vpop.f32.mrf.mxu0
    %v1309 = vadd.f32 %v1236, %v1308
    %v1310 = vand.u32 %v165, 4294901760
    %1311 = vmatmul.f32.gmra.mxu0 %v1310
    %v1312 = vpop.f32.mrf.mxu0
    %v1313 = vadd.f32 %v1242, %v1312
    %v1314 = vand.u32 %v168, 4294901760
    %1315 = vmatmul.f32.gmra.mxu0 %v1314
    %v1316 = vpop.f32.mrf.mxu0
    %v1317 = vadd.f32 %v1248, %v1316
    %v1318 = vand.u32 %v171, 4294901760
    %1319 = vmatmul.f32.gmra.mxu0 %v1318
    %v1320 = vpop.f32.mrf.mxu0
    %v1321 = vadd.f32 %v1254, %v1320
    %v1322 = vand.u32 %v174, 4294901760
    %1323 = vmatmul.f32.gmra.mxu0 %v1322
    %v1324 = vpop.f32.mrf.mxu0
    %v1325 = vadd.f32 %v1260, %v1324
    %v1326 = vand.u32 %v177, 4294901760
    %1327 = vmatmul.f32.gmra.mxu0 %v1326
    %v1328 = vpop.f32.mrf.mxu0
    %v1329 = vadd.f32 %v1266, %v1328
    %v1330 = vand.u32 %v180, 4294901760
    %1331 = vmatmul.f32.gmra.mxu0 %v1330
    %v1332 = vpop.f32.mrf.mxu0
    %v1333 = vadd.f32 %v1272, %v1332
    %1334 = vdwg.mxu0
    %1335 = vmatpush.msra.mxu0 0.0
    %1336 = vmatpush.msra.mxu0 0.0
    %1337 = vmatpush.msra.mxu0 0.0
    %1338 = vmatpush.msra.mxu0 0.0
    %1339 = vmatpush.msra.mxu0 0.0
    %1340 = vmatpush.msra.mxu0 0.0
    %1341 = vmatpush.msra.mxu0 0.0
    %1342 = vmatpush.msra.mxu0 0.0
    %1343 = vmatpush.msra.mxu0 0.0
    %1344 = vmatpush.msra.mxu0 0.0
    %1345 = vmatpush.msra.mxu0 0.0
    %1346 = vmatpush.msra.mxu0 0.0
    %v1347 = vand.u32 %v59, 4294901760
    %1348 = vmatpush.msra.mxu0 %v1347
    %v1349 = vand.u32 %v56, 4294901760
    %1350 = vmatpush.msra.mxu0 %v1349
    %v1351 = vand.u32 %v53, 4294901760
    %1352 = vmatpush.msra.mxu0 %v1351
    %v1353 = vand.u32 %v50, 4294901760
    %1354 = vmatpush.msra.mxu0 %v1353
    %v1355 = vand.u32 %v159, 4294901760
    %1356 = vmatmul.f32.gmra.mxu0 %v1355
    %v1357 = vpop.f32.mrf.mxu0
    %v1358 = vadd.f32 %v1305, %v1357
    %v1359 = vand.u32 %v162, 4294901760
    %1360 = vmatmul.f32.gmra.mxu0 %v1359
    %v1361 = vpop.f32.mrf.mxu0
    %v1362 = vadd.f32 %v1309, %v1361
    %v1363 = vand.u32 %v165, 4294901760
    %1364 = vmatmul.f32.gmra.mxu0 %v1363
    %v1365 = vpop.f32.mrf.mxu0
    %v1366 = vadd.f32 %v1313, %v1365
    %v1367 = vand.u32 %v168, 4294901760
    %1368 = vmatmul.f32.gmra.mxu0 %v1367
    %v1369 = vpop.f32.mrf.mxu0
    %v1370 = vadd.f32 %v1317, %v1369
    %v1371 = vand.u32 %v171, 4294901760
    %1372 = vmatmul.f32.gmra.mxu0 %v1371
    %v1373 = vpop.f32.mrf.mxu0
    %v1374 = vadd.f32 %v1321, %v1373
    %v1375 = vand.u32 %v174, 4294901760
    %1376 = vmatmul.f32.gmra.mxu0 %v1375
    %v1377 = vpop.f32.mrf.mxu0
    %v1378 = vadd.f32 %v1325, %v1377
    %v1379 = vand.u32 %v177, 4294901760
    %1380 = vmatmul.f32.gmra.mxu0 %v1379
    %v1381 = vpop.f32.mrf.mxu0
    %v1382 = vadd.f32 %v1329, %v1381
    %v1383 = vand.u32 %v180, 4294901760
    %1384 = vmatmul.f32.gmra.mxu0 %v1383
    %v1385 = vpop.f32.mrf.mxu0
    %v1386 = vadd.f32 %v1333, %v1385
    %1387 = vdwg.mxu0
    %1388 = vst [vmem:[#allocation7] sm:$0xff] %v554
    %1389 = vst [vmem:[#allocation7 + $0x8] sm:$0xff] %v956
    %1390 = vst [vmem:[#allocation7 + $0x10] sm:$0xff] %v1358
    %1391 = vst [vmem:[#allocation7 + $0x18] sm:$0xff] %v558
    %1392 = vst [vmem:[#allocation7 + $0x20] sm:$0xff] %v960
    %1393 = vst [vmem:[#allocation7 + $0x28] sm:$0xff] %v1362
    %1394 = vst [vmem:[#allocation7 + $0x30] sm:$0xff] %v562
    %1395 = vst [vmem:[#allocation7 + $0x38] sm:$0xff] %v964
    %1396 = vst [vmem:[#allocation7 + $0x40] sm:$0xff] %v1366
    %1397 = vst [vmem:[#allocation7 + $0x48] sm:$0xff] %v566
    %1398 = vst [vmem:[#allocation7 + $0x50] sm:$0xff] %v968
    %1399 = vst [vmem:[#allocation7 + $0x58] sm:$0xff] %v1370
    %1400 = vst [vmem:[#allocation7 + $0x60] sm:$0xff] %v570
    %1401 = vst [vmem:[#allocation7 + $0x68] sm:$0xff] %v972
    %1402 = vst [vmem:[#allocation7 + $0x70] sm:$0xff] %v1374
    %1403 = vst [vmem:[#allocation7 + $0x78] sm:$0xff] %v574
    %1404 = vst [vmem:[#allocation7 + $0x80] sm:$0xff] %v976
    %1405 = vst [vmem:[#allocation7 + $0x88] sm:$0xff] %v1378
    %1406 = vst [vmem:[#allocation7 + $0x90] sm:$0xff] %v578
    %1407 = vst [vmem:[#allocation7 + $0x98] sm:$0xff] %v980
    %1408 = vst [vmem:[#allocation7 + $0xa0] sm:$0xff] %v1382
    %1409 = vst [vmem:[#allocation7 + $0xa8] sm:$0xff] %v582
    %1410 = vst [vmem:[#allocation7 + $0xb0] sm:$0xff] %v984
    %1411 = vst [vmem:[#allocation7 + $0xb8] sm:$0xff] %v1386
    // Predicated region
    $region18: #{tpu_custom_call.1} parent=1 // pred_check
      _
    $region19: #{tpu_custom_call.1} parent=1 // pred_check_branch
      %1413 = sbr.rel (0) target = $region21
    $region20: #{tpu_custom_call.1} parent=1 // pred_region
      %1415 = vsyncadd [#allocation4], 0
      %s1416 = sshll.u32 [#allocation7], 4
      %s1417 = int_to_ptr.vmem [resolvable:$true] %s1416
      %s1418 = sshll.u32 %s2, 4
      %s1419 = int_to_ptr.hbm [resolvable:$true] %s1418
      %1424 = dma.vmem_to_hbm [thread:$0]  %s1417, 3072, %s1419, [#allocation4], 384, 384, 24
    $region21: #{tpu_custom_call.1} parent=1 // pred_fallthru
      _
    // Predicated region
    $region22: #{tpu_custom_call.1} parent=1 // pred_check
      _
    $region23: #{tpu_custom_call.1} parent=1 // pred_check_branch
      %1426 = sbr.rel (0) target = $region25
    $region24: #{tpu_custom_call.1} parent=1 // pred_region
      %1428 = dma.done [#allocation4], 3072
    $region25: #{tpu_custom_call.1} parent=1 // pred_fallthru
      _
    %1429 = vsyncpa [#allocation3], 1
    %1430 = vsyncpa [#allocation6], 1
    %1431 = vsyncpa [#allocation4], 1

</llo_original>
